<compile_context>
chip_gen: v6e
topology: v6e:2x2x1
jax: 0.10.0
libtpu: 0.0.40
codegen_flags: <defaults>
</compile_context>

<pallas_src>
import jax
import jax.numpy as jnp
from jax import lax
from jax.experimental import pallas as pl
from jax.experimental.pallas import tpu as pltpu

EPS = 1e-5                      # nn.BatchNorm2d default
_MEGA = 2                       # parallel slices (v7x has 2 TCs; inert elsewhere)
_VMEM_LIMIT = 48 * 1024 * 1024  # v7x-safe (64 MiB/TC physical), fine on v5e/v6e


def _round_up(x, m):
    return ((x + m - 1) // m) * m


# --------------------------------------------------------------------------
# Pass 1 kernels: conv-as-matmul (bf16 MXU) + per-channel sum / sumsq
# --------------------------------------------------------------------------
def _stats_kernel(p_ref, w_ref, sum_ref, ssq_ref):
    # Small-K path: stats only, conv output recomputed in pass 2.
    @pl.when(pl.program_id(1) == 0)
    def _():
        sum_ref[...] = jnp.zeros_like(sum_ref)
        ssq_ref[...] = jnp.zeros_like(ssq_ref)

    y = jnp.dot(p_ref[...], w_ref[...], preferred_element_type=jnp.float32)
    sum_ref[0:1, :] += jnp.sum(y, axis=0, keepdims=True)
    ssq_ref[0:1, :] += jnp.sum(y * y, axis=0, keepdims=True)


def _conv_stats_kernel(p_ref, w_ref, y_ref, sum_ref, ssq_ref):
    # Large-K path: also store the raw conv output as bf16.
    @pl.when(pl.program_id(1) == 0)
    def _():
        sum_ref[...] = jnp.zeros_like(sum_ref)
        ssq_ref[...] = jnp.zeros_like(ssq_ref)

    y = jnp.dot(p_ref[...], w_ref[...], preferred_element_type=jnp.float32)
    y_ref[...] = y.astype(jnp.bfloat16)
    sum_ref[0:1, :] += jnp.sum(y, axis=0, keepdims=True)
    ssq_ref[0:1, :] += jnp.sum(y * y, axis=0, keepdims=True)


# --------------------------------------------------------------------------
# Pass 2 kernels: (recompute or reload conv) -> folded BN scale/shift -> tanh
# --------------------------------------------------------------------------
def _conv_bn_tanh_kernel(p_ref, w_ref, scale_ref, shift_ref, o_ref):
    cout = o_ref.shape[-1]
    y = jnp.dot(p_ref[...], w_ref[...], preferred_element_type=jnp.float32)
    o_ref[...] = jnp.tanh(y[:, :cout] * scale_ref[...] + shift_ref[...])


def _bn_tanh_kernel(y_ref, scale_ref, shift_ref, o_ref):
    cout = o_ref.shape[-1]
    y = y_ref[...][:, :cout].astype(jnp.float32)
    o_ref[...] = jnp.tanh(y * scale_ref[...] + shift_ref[...])


@jax.jit
def block_forward(x, conv_w, gamma, beta):
    """x: (N, Cin, H, W) NCHW.  conv_w: (Cout, Cin, 4, 4).  Returns NCHW f32."""
    N, Cin, H, W = x.shape
    Cout = conv_w.shape[0]
    Ho, Wo = H // 2, W // 2
    M, K = N * Ho * Wo, Cin * 16
    Cp = _round_up(Cout, 128)              # lane-dense weight / MXU output width

    # Small-K blocks: cheaper to redo the matmul in pass 2 than to write/read
    # the conv intermediate through HBM.
    recompute = K <= 2 * Cp

    # Pass-1 M tiling: balanced across the _MEGA parallel slices, capped so the
    # per-step footprint stays well under the v7x 64 MiB/TC VMEM.
    TM = min(512, _round_up(max(-(-M // _MEGA), 1), 8))
    Mp = _round_up(M, _MEGA * TM)
    T2 = Mp // (_MEGA * TM)                # tiles per parallel slice

    # Pass-2 tile: larger (streaming pass) when it divides Mp evenly.
    TM2 = TM
    for cand in (2048, 1024, 512):
        if cand <= Mp and Mp % cand == 0:
            TM2 = cand
            break

    # ---- glue: reflect pad + patch extraction (identity-kernel conv, bf16) ---
    xpad = jnp.pad(x, ((0, 0), (0, 0), (1, 1), (1, 1)),
                   mode="reflect").astype(jnp.bfloat16)
    patches = lax.conv_general_dilated_patches(
        xpad, (4, 4), (2, 2), "VALID",
        dimension_numbers=("NCHW", "OIHW", "NHWC"))       # (N, Ho, Wo, Cin*16)
    patches = patches.reshape(M, K)
    if Mp != M:                                           # no K padding in HBM
        patches = jnp.pad(patches, ((0, Mp - M), (0, 0)))

    # weight: (Cout, Cin, 4, 4) -> (Cin*16, Cout), feature order (c*16+ky*4+kx)
    # matching the patch layout, then zero-pad only the (tiny) output dim.
    w_mat = conv_w.transpose(1, 2, 3, 0).reshape(K, Cout).astype(jnp.bfloat16)
    w_mat = jnp.pad(w_mat, ((0, 0), (0, Cp - Cout)))

    # ---- pass 1: tiled conv matmul + per-channel stats accumulation ----------
    acc_shape = jax.ShapeDtypeStruct((_MEGA * 8, Cp), jnp.float32)
    p_spec = pl.BlockSpec((TM, K), lambda p, i: (p * T2 + i, 0))
    w_spec = pl.BlockSpec((K, Cp), lambda p, i: (0, 0))
    acc_spec = pl.BlockSpec((8, Cp), lambda p, i: (p, 0))
    params1 = pltpu.CompilerParams(
        dimension_semantics=("parallel", "arbitrary"),
        vmem_limit_bytes=_VMEM_LIMIT)

    if recompute:
        psum, pssq = pl.pallas_call(
            _stats_kernel,
            out_shape=(acc_shape, acc_shape),
            grid=(_MEGA, T2),
            in_specs=[p_spec, w_spec],
            out_specs=[acc_spec, acc_spec],
            compiler_params=params1,
            cost_estimate=pl.CostEstimate(
                flops=2 * Mp * K * Cp + 3 * Mp * Cp,
                transcendentals=0,
                bytes_accessed=Mp * K * 2 + K * Cp * 2 + 2 * _MEGA * 8 * Cp * 4),
        )(patches, w_mat)
        y_conv = None
    else:
        y_conv, psum, pssq = pl.pallas_call(
            _conv_stats_kernel,
            out_shape=(jax.ShapeDtypeStruct((Mp, Cp), jnp.bfloat16),
                       acc_shape, acc_shape),
            grid=(_MEGA, T2),
            in_specs=[p_spec, w_spec],
            out_specs=[pl.BlockSpec((TM, Cp), lambda p, i: (p * T2 + i, 0)),
                       acc_spec, acc_spec],
            compiler_params=params1,
            cost_estimate=pl.CostEstimate(
                flops=2 * Mp * K * Cp + 3 * Mp * Cp,
                transcendentals=0,
                bytes_accessed=(Mp * K * 2 + K * Cp * 2 + Mp * Cp * 2
                                + 2 * _MEGA * 8 * Cp * 4)),
        )(patches, w_mat)

    # ---- fold BN into per-channel scale/shift once (tiny XLA op) -------------
    total = jnp.sum(psum, axis=0)[:Cout]
    total_sq = jnp.sum(pssq, axis=0)[:Cout]
    mean = total / M
    var = total_sq / M - mean * mean                    # biased batch variance
    scale = gamma.astype(jnp.float32) * lax.rsqrt(var + EPS)
    shift = beta.astype(jnp.float32) - mean * scale
    scale2 = scale.reshape(1, Cout)
    shift2 = shift.reshape(1, Cout)

    # ---- pass 2: (re)build conv tile, scale/shift + tanh, write NHWC-flat ----
    params2 = pltpu.CompilerParams(
        dimension_semantics=("parallel",),
        vmem_limit_bytes=_VMEM_LIMIT)
    sc_spec = pl.BlockSpec((1, Cout), lambda i: (0, 0))
    out_spec = pl.BlockSpec((TM2, Cout), lambda i: (i, 0))
    out_shape = jax.ShapeDtypeStruct((Mp, Cout), jnp.float32)

    if recompute:
        out_flat = pl.pallas_call(
            _conv_bn_tanh_kernel,
            out_shape=out_shape,
            grid=(Mp // TM2,),
            in_specs=[pl.BlockSpec((TM2, K), lambda i: (i, 0)),
                      pl.BlockSpec((K, Cp), lambda i: (0, 0)),
                      sc_spec, sc_spec],
            out_specs=out_spec,
            compiler_params=params2,
            cost_estimate=pl.CostEstimate(
                flops=2 * Mp * K * Cp + 2 * Mp * Cout,
                transcendentals=Mp * Cout,
                bytes_accessed=Mp * K * 2 + K * Cp * 2 + Mp * Cout * 4),
        )(patches, w_mat, scale2, shift2)
    else:
        out_flat = pl.pallas_call(
            _bn_tanh_kernel,
            out_shape=out_shape,
            grid=(Mp // TM2,),
            in_specs=[pl.BlockSpec((TM2, Cp), lambda i: (i, 0)),
                      sc_spec, sc_spec],
            out_specs=out_spec,
            compiler_params=params2,
            cost_estimate=pl.CostEstimate(
                flops=2 * Mp * Cout,
                transcendentals=Mp * Cout,
                bytes_accessed=Mp * Cp * 2 + Mp * Cout * 4),
        )(y_conv, scale2, shift2)

    out = out_flat[:M].reshape(N, Ho, Wo, Cout)
    # NOTE: in a full UNet keep activations NHWC between Blocks; this transpose
    # exists only to match the PyTorch NCHW interface of the module.
    return out.transpose(0, 3, 1, 2)


# --------------------------------------------------------------------------
# Reference (same bf16 conv inputs / f32 accumulation as the kernel)
# --------------------------------------------------------------------------
def _reference(x, conv_w, gamma, beta):
    xpad = jnp.pad(x, ((0, 0), (0, 0), (1, 1), (1, 1)), mode="reflect")
    y = lax.conv_general_dilated(
        xpad.astype(jnp.bfloat16), conv_w.astype(jnp.bfloat16),
        window_strides=(2, 2), padding="VALID",
        dimension_numbers=("NCHW", "OIHW", "NCHW"),
        preferred_element_type=jnp.float32)
    mean = jnp.mean(y, axis=(0, 2, 3), keepdims=True)
    var = jnp.mean((y - mean) ** 2, axis=(0, 2, 3), keepdims=True)
    xhat = (y - mean) * lax.rsqrt(var + EPS)
    return jnp.tanh(xhat * gamma.reshape(1, -1, 1, 1) + beta.reshape(1, -1, 1, 1))


if __name__ == "__main__":
    key = jax.random.PRNGKey(0)
    k_x, k_w, k_g, k_b = jax.random.split(key, 4)

    N, Cin, H, W = 2, 4, 16, 16
    Cout = 8

    x = jax.random.normal(k_x, (N, Cin, H, W), dtype=jnp.float32)
    conv_w = 0.1 * jax.random.normal(k_w, (Cout, Cin, 4, 4), dtype=jnp.float32)
    gamma = 1.0 + 0.1 * jax.random.normal(k_g, (Cout,), dtype=jnp.float32)
    beta = 0.1 * jax.random.normal(k_b, (Cout,), dtype=jnp.float32)

    out = jax.block_until_ready(block_forward(x, conv_w, gamma, beta))
    ref = jax.block_until_ready(_reference(x, conv_w, gamma, beta))

    assert out.shape == (N, Cout, H // 2, W // 2), out.shape
    assert jnp.allclose(out, ref, atol=5e-3, rtol=5e-3), \
        float(jnp.max(jnp.abs(out - ref)))

    print("KERNEL_OK")
</pallas_src>

<mosaic_0001>
module attributes {stable_mosaic.version = 11 : i64} {
  func.func @_stats_kernel(%arg0: i32, %arg1: i32, %arg2: memref<64x64xbf16, #tpu.memory_space<vmem>>, %arg3: memref<64x128xbf16, #tpu.memory_space<vmem>>, %arg4: memref<8x128xf32, #tpu.memory_space<vmem>>, %arg5: memref<8x128xf32, #tpu.memory_space<vmem>>) attributes {dimension_semantics = [#tpu.dimension_semantics<parallel>, #tpu.dimension_semantics<arbitrary>], iteration_bounds = array<i64: 2, 1>, scalar_prefetch = 0 : i64, scratch_operands = 0 : i64, tpu.core_type = #tpu.core_type<tc>, window_params = [{transform_indices = @transform_0, window_bounds = array<i64: 64, 64>}, {pipeline_mode = #tpu.pipeline_mode<synchronous>, transform_indices = @transform_1, window_bounds = array<i64: 64, 128>}, {transform_indices = @transform_2, window_bounds = array<i64: 8, 128>}, {transform_indices = @transform_3, window_bounds = array<i64: 8, 128>}]} {
    %c0_i32 = arith.constant 0 : i32
    %0 = arith.cmpi eq, %arg1, %c0_i32 : i32
    %1 = arith.extui %0 : i1 to i32
    %c0_i32_0 = arith.constant 0 : i32
    %2 = arith.cmpi ne, %1, %c0_i32_0 : i32
    scf.if %2 {
      %cst_14 = arith.constant 0.000000e+00 : f32
      %17 = vector.broadcast %cst_14 : f32 to vector<8x128xf32>
      %c0_15 = arith.constant 0 : index
      %c0_16 = arith.constant 0 : index
      %18 = vector.load %arg4[%c0_15, %c0_16] : memref<8x128xf32, #tpu.memory_space<vmem>>, vector<8x128xf32>
      tpu.vector_store %arg4[%c0_15, %c0_16], %17 {strides = array<i32>} : memref<8x128xf32, #tpu.memory_space<vmem>>, vector<8x128xf32>,
      %cst_17 = arith.constant 0.000000e+00 : f32
      %19 = vector.broadcast %cst_17 : f32 to vector<8x128xf32>
      %c0_18 = arith.constant 0 : index
      %c0_19 = arith.constant 0 : index
      %20 = vector.load %arg5[%c0_18, %c0_19] : memref<8x128xf32, #tpu.memory_space<vmem>>, vector<8x128xf32>
      tpu.vector_store %arg5[%c0_18, %c0_19], %19 {strides = array<i32>} : memref<8x128xf32, #tpu.memory_space<vmem>>, vector<8x128xf32>,
    } else {
    }
    %c0 = arith.constant 0 : index
    %c0_1 = arith.constant 0 : index
    %3 = vector.load %arg2[%c0, %c0_1] : memref<64x64xbf16, #tpu.memory_space<vmem>>, vector<64x64xbf16>
    %c0_2 = arith.constant 0 : index
    %c0_3 = arith.constant 0 : index
    %4 = vector.load %arg3[%c0_2, %c0_3] : memref<64x128xbf16, #tpu.memory_space<vmem>>, vector<64x128xbf16>
    %cst = arith.constant dense<0.000000e+00> : vector<64x128xf32>
    %5 = tpu.matmul %3, %4, %cst {dimension_numbers = #tpu.dot_dimension_numbers<[1], [0], [0], [1], [0, 0, 1, 1], [], []>} : vector<64x64xbf16>, vector<64x128xbf16>, vector<64x128xf32> -> vector<64x128xf32>
    %c0_4 = arith.constant 0 : index
    %c0_5 = arith.constant 0 : index
    %6 = vector.load %arg4[%c0_4, %c0_5] : memref<8x128xf32, #tpu.memory_space<vmem>>, vector<1x128xf32>
    %cst_6 = arith.constant dense<0.000000e+00> : vector<128xf32>
    %7 = vector.multi_reduction <add>, %5, %cst_6 [0] : vector<64x128xf32> to vector<128xf32>
    %8 = vector.shape_cast %7 : vector<128xf32> to vector<1x128xf32>
    %9 = arith.addf %6, %8 : vector<1x128xf32>
    %c0_7 = arith.constant 0 : index
    %c0_8 = arith.constant 0 : index
    %10 = vector.load %arg4[%c0_7, %c0_8] : memref<8x128xf32, #tpu.memory_space<vmem>>, vector<1x128xf32>
    tpu.vector_store %arg4[%c0_7, %c0_8], %9 {strides = array<i32>} : memref<8x128xf32, #tpu.memory_space<vmem>>, vector<1x128xf32>,
    %c0_9 = arith.constant 0 : index
    %c0_10 = arith.constant 0 : index
    %11 = vector.load %arg5[%c0_9, %c0_10] : memref<8x128xf32, #tpu.memory_space<vmem>>, vector<1x128xf32>
    %12 = arith.mulf %5, %5 : vector<64x128xf32>
    %cst_11 = arith.constant dense<0.000000e+00> : vector<128xf32>
    %13 = vector.multi_reduction <add>, %12, %cst_11 [0] : vector<64x128xf32> to vector<128xf32>
    %14 = vector.shape_cast %13 : vector<128xf32> to vector<1x128xf32>
    %15 = arith.addf %11, %14 : vector<1x128xf32>
    %c0_12 = arith.constant 0 : index
    %c0_13 = arith.constant 0 : index
    %16 = vector.load %arg5[%c0_12, %c0_13] : memref<8x128xf32, #tpu.memory_space<vmem>>, vector<1x128xf32>
    tpu.vector_store %arg5[%c0_12, %c0_13], %15 {strides = array<i32>} : memref<8x128xf32, #tpu.memory_space<vmem>>, vector<1x128xf32>,
    return
  }
  func.func @transform_0(%arg0: i32, %arg1: i32) -> (i32, i32) {
    %c1_i32 = arith.constant 1 : i32
    %0 = arith.muli %arg0, %c1_i32 : i32
    %1 = arith.addi %0, %arg1 : i32
    %c0_i32 = arith.constant 0 : i32
    %c0_i32_0 = arith.constant 0 : i32
    return %1, %c0_i32 : i32, i32
  }
  func.func @transform_1(%arg0: i32, %arg1: i32) -> (i32, i32) {
    %c0_i32 = arith.constant 0 : i32
    %c0_i32_0 = arith.constant 0 : i32
    %c0_i32_1 = arith.constant 0 : i32
    return %c0_i32, %c0_i32_0 : i32, i32
  }
  func.func @transform_2(%arg0: i32, %arg1: i32) -> (i32, i32) {
    %c0_i32 = arith.constant 0 : i32
    %c0_i32_0 = arith.constant 0 : i32
    return %arg0, %c0_i32 : i32, i32
  }
  func.func @transform_3(%arg0: i32, %arg1: i32) -> (i32, i32) {
    %c0_i32 = arith.constant 0 : i32
    %c0_i32_0 = arith.constant 0 : i32
    return %arg0, %c0_i32 : i32, i32
  }
}

module attributes {stable_mosaic.version = 11 : i64} {
  func.func @_conv_bn_tanh_kernel(%arg0: i32, %arg1: memref<64x64xbf16, #tpu.memory_space<vmem>>, %arg2: memref<64x128xbf16, #tpu.memory_space<vmem>>, %arg3: memref<1x8xf32, #tpu.memory_space<vmem>>, %arg4: memref<1x8xf32, #tpu.memory_space<vmem>>, %arg5: memref<64x8xf32, #tpu.memory_space<vmem>>) attributes {dimension_semantics = [#tpu.dimension_semantics<parallel>], iteration_bounds = array<i64: 2>, scalar_prefetch = 0 : i64, scratch_operands = 0 : i64, tpu.core_type = #tpu.core_type<tc>, window_params = [{transform_indices = @transform_0, window_bounds = array<i64: 64, 64>}, {pipeline_mode = #tpu.pipeline_mode<synchronous>, transform_indices = @transform_1, window_bounds = array<i64: 64, 128>}, {pipeline_mode = #tpu.pipeline_mode<synchronous>, transform_indices = @transform_2, window_bounds = array<i64: 1, 8>}, {pipeline_mode = #tpu.pipeline_mode<synchronous>, transform_indices = @transform_3, window_bounds = array<i64: 1, 8>}, {transform_indices = @transform_4, window_bounds = array<i64: 64, 8>}]} {
    %c0 = arith.constant 0 : index
    %c0_0 = arith.constant 0 : index
    %0 = vector.load %arg1[%c0, %c0_0] : memref<64x64xbf16, #tpu.memory_space<vmem>>, vector<64x64xbf16>
    %c0_1 = arith.constant 0 : index
    %c0_2 = arith.constant 0 : index
    %1 = vector.load %arg2[%c0_1, %c0_2] : memref<64x128xbf16, #tpu.memory_space<vmem>>, vector<64x128xbf16>
    %cst = arith.constant dense<0.000000e+00> : vector<64x128xf32>
    %2 = tpu.matmul %0, %1, %cst {dimension_numbers = #tpu.dot_dimension_numbers<[1], [0], [0], [1], [0, 0, 1, 1], [], []>} : vector<64x64xbf16>, vector<64x128xbf16>, vector<64x128xf32> -> vector<64x128xf32>
    %3 = vector.extract_strided_slice %2 {offsets = [0, 0], sizes = [64, 8], strides = [1, 1]} : vector<64x128xf32> to vector<64x8xf32>
    %c0_3 = arith.constant 0 : index
    %c0_4 = arith.constant 0 : index
    %4 = vector.load %arg3[%c0_3, %c0_4] : memref<1x8xf32, #tpu.memory_space<vmem>>, vector<1x8xf32>
    %5 = vector.broadcast %4 : vector<1x8xf32> to vector<64x8xf32>
    %6 = arith.mulf %3, %5 : vector<64x8xf32>
    %c0_5 = arith.constant 0 : index
    %c0_6 = arith.constant 0 : index
    %7 = vector.load %arg4[%c0_5, %c0_6] : memref<1x8xf32, #tpu.memory_space<vmem>>, vector<1x8xf32>
    %8 = vector.broadcast %7 : vector<1x8xf32> to vector<64x8xf32>
    %9 = arith.addf %6, %8 : vector<64x8xf32>
    %10 = math.tanh %9 : vector<64x8xf32>
    %c0_7 = arith.constant 0 : index
    %c0_8 = arith.constant 0 : index
    %11 = vector.load %arg5[%c0_7, %c0_8] : memref<64x8xf32, #tpu.memory_space<vmem>>, vector<64x8xf32>
    tpu.vector_store %arg5[%c0_7, %c0_8], %10 {strides = array<i32>} : memref<64x8xf32, #tpu.memory_space<vmem>>, vector<64x8xf32>,
    return
  }
  func.func @transform_0(%arg0: i32) -> (i32, i32) {
    %c0_i32 = arith.constant 0 : i32
    %c0_i32_0 = arith.constant 0 : i32
    return %arg0, %c0_i32 : i32, i32
  }
  func.func @transform_1(%arg0: i32) -> (i32, i32) {
    %c0_i32 = arith.constant 0 : i32
    %c0_i32_0 = arith.constant 0 : i32
    %c0_i32_1 = arith.constant 0 : i32
    return %c0_i32, %c0_i32_0 : i32, i32
  }
  func.func @transform_2(%arg0: i32) -> (i32, i32) {
    %c0_i32 = arith.constant 0 : i32
    %c0_i32_0 = arith.constant 0 : i32
    %c0_i32_1 = arith.constant 0 : i32
    return %c0_i32, %c0_i32_0 : i32, i32
  }
  func.func @transform_3(%arg0: i32) -> (i32, i32) {
    %c0_i32 = arith.constant 0 : i32
    %c0_i32_0 = arith.constant 0 : i32
    %c0_i32_1 = arith.constant 0 : i32
    return %c0_i32, %c0_i32_0 : i32, i32
  }
  func.func @transform_4(%arg0: i32) -> (i32, i32) {
    %c0_i32 = arith.constant 0 : i32
    %c0_i32_0 = arith.constant 0 : i32
    return %arg0, %c0_i32 : i32, i32
  }
}

</mosaic_0001>

<llo_original>
// kernel: block_forward.3
$region0: #{block_forward.3}
  #allocation0 [shape = 'u32[]', space=smem, size = 0x4, offset = 0x4, fixed_abs, tag = 'smem constant byte address 0x4 - core index']
  #allocation1 [shape = 'u32[144,128]{1,0:T(1,128)}', space=vmem, size = 0x12000, scoped, tag = 'internal scratch']
  %s0 = inlined_call_operand.vmem [shape: bf16[128,64], index: 0, kind: input, shape index: {}]
  %s1 = inlined_call_operand.vmem [shape: bf16[64,128], index: 1, kind: input, shape index: {}]
  %s2 = inlined_call_operand.vmem [shape: f32[1,8], index: 2, kind: input, shape index: {}]
  %s3 = inlined_call_operand.vmem [shape: f32[1,8], index: 3, kind: input, shape index: {}]
  %s4 = inlined_call_operand.vmem [shape: f32[128,8], index: 4, kind: output, shape index: {}]
  %s5 = sld [smem:[#allocation0]]
  $region49: #{block_forward.3} parent=0
    _
  %s7 = ssub.s32 1, %s5
  %s8 = scalar_select 0, %s7, %s5
  loop: start=0, step=1, limit=4
  $region2: #{block_forward.3} parent=0 // loop_pre_header
    _
  $region3: #{block_forward.3} parent=0 // loop_header
    %s10 = sphi 0, %s14
    %p11 = scmp.ge.s32.totalorder %s10, 4
    %s20 = sphi 0, %s22
    %s23 = sphi 0, %s20
    %s24 = sphi 0, %s23
    %s40 = sphi 0, %s24
    %s44 = sphi 0, %s44
    %s46 = sphi 0, %s44
    %s47 = sphi 0, %s46
    %s61 = sphi 0, %s47
    %s65 = sphi 0, %s65
    %s67 = sphi 0, %s65
    %s68 = sphi 0, %s67
    %s82 = sphi 0, %s68
    %s86 = sphi 0, %s86
    %s88 = sphi 0, %s86
    %s89 = sphi 0, %s88
    %s103 = sphi 0, %s89
    %s109 = sphi 0, %s111
    %s112 = sphi 0, %s109
    %s113 = sphi 0, %s112
    %s129 = sphi 0, %s113
  $region4: #{block_forward.3} parent=0 // loop_header_branch
    %13 = sbr.rel (%p11) target = $region8
  $region5: #{block_forward.3} parent=0 // loop_body
    %s15 = ssub.s32 %s10, 1
    %s16 = ssub.s32 %s10, 2
    %s17 = sadd.s32 %s10, 1
    %s18 = ssub.s32 %s10, %s17
    %p19 = scmp.eq.s32.totalorder %s18, 0
    %s21 = sadd.s32 %s20, 1
    %s22 = scalar_select %p19, %s20, %s21
    %p25 = pneg %p19
    %p26 = scmp.eq.s32.totalorder %s10, 1
    %p27 = por %p25, %p26
    %p28 = scmp.ne.s32.totalorder %s20, %s23
    %p29 = scmp.eq.s32.totalorder %s10, 0
    %p30 = por %p28, %p29
    %p31 = scmp.ne.s32.totalorder %s20, %s23
    %p32 = scmp.eq.s32.totalorder %s15, 1
    %p33 = por %p31, %p32
    %p34 = scmp.ne.s32.totalorder %s23, %s24
    %p35 = scmp.eq.s32.totalorder %s15, 0
    %p36 = por %p34, %p35
    %p37 = scmp.ne.s32.totalorder %s23, %s24
    %p38 = scmp.eq.s32.totalorder %s16, 1
    %p39 = por %p37, %p38
    %p41 = scmp.ne.s32.totalorder %s24, %s40
    %p42 = scmp.eq.s32.totalorder %s16, 0
    %p43 = por %p41, %p42
    %s45 = sadd.s32 %s44, 1
    %p48 = scmp.eq.s32.totalorder %s10, 1
    %p49 = scmp.ne.s32.totalorder %s44, %s46
    %p50 = scmp.eq.s32.totalorder %s10, 0
    %p51 = por %p49, %p50
    %p52 = scmp.ne.s32.totalorder %s44, %s46
    %p53 = scmp.eq.s32.totalorder %s15, 1
    %p54 = por %p52, %p53
    %p55 = scmp.ne.s32.totalorder %s46, %s47
    %p56 = scmp.eq.s32.totalorder %s15, 0
    %p57 = por %p55, %p56
    %p58 = scmp.ne.s32.totalorder %s46, %s47
    %p59 = scmp.eq.s32.totalorder %s16, 1
    %p60 = por %p58, %p59
    %p62 = scmp.ne.s32.totalorder %s47, %s61
    %p63 = scmp.eq.s32.totalorder %s16, 0
    %p64 = por %p62, %p63
    %s66 = sadd.s32 %s65, 1
    %p69 = scmp.eq.s32.totalorder %s10, 1
    %p70 = scmp.ne.s32.totalorder %s65, %s67
    %p71 = scmp.eq.s32.totalorder %s10, 0
    %p72 = por %p70, %p71
    %p73 = scmp.ne.s32.totalorder %s65, %s67
    %p74 = scmp.eq.s32.totalorder %s15, 1
    %p75 = por %p73, %p74
    %p76 = scmp.ne.s32.totalorder %s67, %s68
    %p77 = scmp.eq.s32.totalorder %s15, 0
    %p78 = por %p76, %p77
    %p79 = scmp.ne.s32.totalorder %s67, %s68
    %p80 = scmp.eq.s32.totalorder %s16, 1
    %p81 = por %p79, %p80
    %p83 = scmp.ne.s32.totalorder %s68, %s82
    %p84 = scmp.eq.s32.totalorder %s16, 0
    %p85 = por %p83, %p84
    %s87 = sadd.s32 %s86, 1
    %p90 = scmp.eq.s32.totalorder %s10, 1
    %p91 = scmp.ne.s32.totalorder %s86, %s88
    %p92 = scmp.eq.s32.totalorder %s10, 0
    %p93 = por %p91, %p92
    %p94 = scmp.ne.s32.totalorder %s86, %s88
    %p95 = scmp.eq.s32.totalorder %s15, 1
    %p96 = por %p94, %p95
    %p97 = scmp.ne.s32.totalorder %s88, %s89
    %p98 = scmp.eq.s32.totalorder %s15, 0
    %p99 = por %p97, %p98
    %p100 = scmp.ne.s32.totalorder %s88, %s89
    %p101 = scmp.eq.s32.totalorder %s16, 1
    %p102 = por %p100, %p101
    %p104 = scmp.ne.s32.totalorder %s89, %s103
    %p105 = scmp.eq.s32.totalorder %s16, 0
    %p106 = por %p104, %p105
    %s107 = ssub.s32 %s10, %s17
    %p108 = scmp.eq.s32.totalorder %s107, 0
    %s110 = sadd.s32 %s109, 1
    %s111 = scalar_select %p108, %s109, %s110
    %p114 = pneg %p108
    %p115 = scmp.eq.s32.totalorder %s10, 1
    %p116 = por %p114, %p115
    %p117 = scmp.ne.s32.totalorder %s109, %s112
    %p118 = scmp.eq.s32.totalorder %s10, 0
    %p119 = por %p117, %p118
    %p120 = scmp.ne.s32.totalorder %s109, %s112
    %p121 = scmp.eq.s32.totalorder %s15, 1
    %p122 = por %p120, %p121
    %p123 = scmp.ne.s32.totalorder %s112, %s113
    %p124 = scmp.eq.s32.totalorder %s15, 0
    %p125 = por %p123, %p124
    %p126 = scmp.ne.s32.totalorder %s112, %s113
    %p127 = scmp.eq.s32.totalorder %s16, 1
    %p128 = por %p126, %p127
    %p130 = scmp.ne.s32.totalorder %s113, %s129
    %p131 = scmp.eq.s32.totalorder %s16, 0
    %p132 = por %p130, %p131
    %p133 = scmp.le.s32.totalorder 1, %s10
    %p134 = scmp.lt.s32.totalorder %s10, 3
    %p135 = pnand %p133, %p134
    %p136 = pneg %p135
    // Predicated region
    $region9: #{block_forward.3} parent=5 // pred_check
      _
    $region10: #{block_forward.3} parent=5 // pred_check_branch
      %138 = sbr.rel (%p135) target = $region12
    $region11: #{block_forward.3} parent=5 // pred_region
      %s139 = ssub.s32 %s10, 1
      // Predicated region
      $region13: #{block_forward.3} parent=11 // pred_check
        %p140 = pneg %p57
      $region14: #{block_forward.3} parent=11 // pred_check_branch
        %142 = sbr.rel (%p140) target = $region16
      $region15: #{block_forward.3} parent=11 // pred_region
        _
      $region16: #{block_forward.3} parent=11 // pred_fallthru
        _
      // Predicated region
      $region17: #{block_forward.3} parent=11 // pred_check
        %p143 = pneg %p78
      $region18: #{block_forward.3} parent=11 // pred_check_branch
        %145 = sbr.rel (%p143) target = $region20
      $region19: #{block_forward.3} parent=11 // pred_region
        _
      $region20: #{block_forward.3} parent=11 // pred_fallthru
        _
      // Predicated region
      $region21: #{block_forward.3} parent=11 // pred_check
        %p146 = pneg %p99
      $region22: #{block_forward.3} parent=11 // pred_check_branch
        %148 = sbr.rel (%p146) target = $region24
      $region23: #{block_forward.3} parent=11 // pred_region
        _
      $region24: #{block_forward.3} parent=11 // pred_fallthru
        _
    $region12: #{block_forward.3} parent=5 // pred_fallthru
      _
    %p149 = scmp.lt.s32.totalorder %s10, 2
    // Predicated region
    $region25: #{block_forward.3} parent=5 // pred_check
      %p150 = pneg %p149
    $region26: #{block_forward.3} parent=5 // pred_check_branch
      %152 = sbr.rel (%p150) target = $region28
    $region27: #{block_forward.3} parent=5 // pred_region
      // Predicated region
      $region29: #{block_forward.3} parent=27 // pred_check
        %p153 = pneg %p30
      $region30: #{block_forward.3} parent=27 // pred_check_branch
        %155 = sbr.rel (%p153) target = $region32
      $region31: #{block_forward.3} parent=27 // pred_region
        %s156 = smul.u32 8, %s10
        %p157 = scmp.lt.s32.totalorder %s156, 15
        %s158 = scalar_select %p157, %s156, 15
        %s159 = smul.addr %s158, 4
        %s160 = scalar_lea.vmem %s0, %s159
        %s161 = smul.u32 8, %s10
      $region32: #{block_forward.3} parent=27 // pred_fallthru
        _
    $region28: #{block_forward.3} parent=5 // pred_fallthru
      _
    %p162 = scmp.le.s32.totalorder 1, %s10
    %p163 = scmp.lt.s32.totalorder %s10, 3
    %p164 = pnand %p162, %p163
    %p165 = pneg %p164
    // Predicated region
    $region33: #{block_forward.3} parent=5 // pred_check
      _
    $region34: #{block_forward.3} parent=5 // pred_check_branch
      %167 = sbr.rel (%p164) target = $region36
    $region35: #{block_forward.3} parent=5 // pred_region
      %s168 = ssub.s32 %s10, 1
      %s169 = smul.u32 8, %s15
      %p170 = scmp.lt.s32.totalorder %s169, 15
      %s171 = scalar_select %p170, %s169, 15
      %s172 = smul.addr %s171, 4
      %s173 = scalar_lea.vmem %s0, %s172
      %p174 = pneg %p36
      %p175 = pneg %p33
      %p176 = pneg %p57
      %p177 = pneg %p54
      %p178 = pneg %p78
      %p179 = pneg %p75
      %p180 = pneg %p99
      %p181 = pneg %p96
      %p182 = pneg %p125
      %p183 = pneg %p122
      %s184 = smul.u32 8, %s15
      %p185 = scmp.lt.s32.totalorder %s184, 15
      %s186 = scalar_select %p185, %s184, 15
      %s187 = smul.addr %s186, 8
      %s188 = scalar_lea.vmem %s4, %s187
      %s189 = smul.u32 8, %s15
      %p190 = scmp.lt.s32.totalorder %s189, 15
      %s191 = scalar_select %p190, %s189, 15
      %s192 = smul.addr %s191, 4
      %s193 = scalar_lea.vmem %s0, %s192
      %s194 = smul.u32 8, %s15
      %s195 = smul.u32 8, %s15
      %p196 = scmp.lt.s32.totalorder %s195, 15
      %s197 = scalar_select %p196, %s195, 15
      %s198 = smul.addr %s197, 8
      %s199 = scalar_lea.vmem %s4, %s198
      %s200 = smul.u32 8, %s15
      %v202 = vld [vmem:[%s193] sm:$0xf]
      %v203 = vld [vmem:[%s193 + $0x4] sm:$0xf]
      %v204 = vld [vmem:[%s193 + $0x8] sm:$0xf]
      %v205 = vld [vmem:[%s193 + $0xc] sm:$0xf]
      %v206 = vld [vmem:[%s193 + $0x10] sm:$0xf]
      %v207 = vld [vmem:[%s193 + $0x14] sm:$0xf]
      %v208 = vld [vmem:[%s193 + $0x18] sm:$0xf]
      %v209 = vld [vmem:[%s193 + $0x1c] sm:$0xf]
      %v210 = vld [vmem:[%s1] sm:$0xf]
      %v211 = vld [vmem:[%s1 + $0x4] sm:$0xf]
      %v212 = vld [vmem:[%s1 + $0x8] sm:$0xf]
      %v213 = vld [vmem:[%s1 + $0xc] sm:$0xf]
      %v214 = vld [vmem:[%s1 + $0x10] sm:$0xf]
      %v215 = vld [vmem:[%s1 + $0x14] sm:$0xf]
      %v216 = vld [vmem:[%s1 + $0x18] sm:$0xf]
      %v217 = vld [vmem:[%s1 + $0x1c] sm:$0xf]
      %v226 = vunpack.c.l.b16 %v202
      %v227 = vunpack.c.l.b16 %v203
      %v228 = vunpack.c.l.b16 %v204
      %v229 = vunpack.c.l.b16 %v205
      %v230 = vunpack.c.l.b16 %v206
      %v231 = vunpack.c.l.b16 %v207
      %v232 = vunpack.c.l.b16 %v208
      %v233 = vunpack.c.l.b16 %v209
      %v234 = vpack.c.b16 %v227, %v226
      %v235 = vpack.c.b16 %v229, %v228
      %v236 = vpack.c.b16 %v231, %v230
      %v237 = vpack.c.b16 %v233, %v232
      %v246 = vunpack.c.l.b16 %v210
      %v247 = vunpack.c.l.b16 %v211
      %v248 = vunpack.c.l.b16 %v212
      %v249 = vunpack.c.l.b16 %v213
      %v250 = vunpack.c.l.b16 %v214
      %v251 = vunpack.c.l.b16 %v215
      %v252 = vunpack.c.l.b16 %v216
      %v253 = vunpack.c.l.b16 %v217
      %v254 = vpack.c.b16 %v247, %v246
      %v255 = vpack.c.b16 %v249, %v248
      %v256 = vpack.c.b16 %v251, %v250
      %v257 = vpack.c.b16 %v253, %v252
      %vm262 = vcmask 523264
      %v264 = vsel %vm262, %v234, 0
      %v267 = vsel %vm262, %v235, 0
      %v270 = vsel %vm262, %v236, 0
      %v273 = vsel %vm262, %v237, 0
      %275 = vmatprep.subr.bf16.mxu0 0
      %276 = vmatpush1.bf16.msra.mxu0 0
      %277 = vmatprep.subr.bf16.mxu0 0
      %278 = vmatpush1.bf16.msra.mxu0 0
      %279 = vmatprep.subr.bf16.mxu0 0
      %280 = vmatpush1.bf16.msra.mxu0 0
      %281 = vmatprep.subr.bf16.mxu0 0
      %282 = vmatpush1.bf16.msra.mxu0 0
      %283 = vmatprep.subr.bf16.mxu0 0
      %284 = vmatpush1.bf16.msra.mxu0 %v257
      %285 = vmatprep.subr.bf16.mxu0 0
      %286 = vmatpush1.bf16.msra.mxu0 %v256
      %287 = vmatprep.subr.bf16.mxu0 0
      %288 = vmatpush1.bf16.msra.mxu0 %v255
      %289 = vmatprep.subr.bf16.mxu0 0
      %290 = vmatpush1.bf16.msra.mxu0 %v254
      %291 = vmatprep.subr.bf16.mxu0 0
      %292 = vmatpush2.bf16.msra.mxu0 0
      %293 = vmatprep.subr.bf16.mxu0 0
      %294 = vmatpush2.bf16.msra.mxu0 0
      %295 = vmatprep.subr.bf16.mxu0 0
      %296 = vmatpush2.bf16.msra.mxu0 0
      %297 = vmatprep.subr.bf16.mxu0 0
      %298 = vmatpush2.bf16.msra.mxu0 0
      %299 = vmatprep.subr.bf16.mxu0 0
      %300 = vmatpush2.bf16.msra.mxu0 0
      %301 = vmatprep.subr.bf16.mxu0 0
      %302 = vmatpush2.bf16.msra.mxu0 0
      %303 = vmatprep.subr.bf16.mxu0 0
      %304 = vmatpush2.bf16.msra.mxu0 0
      %305 = vmatprep.subr.bf16.mxu0 0
      %306 = vmatpush2.bf16.msra.mxu0 0
      %307 = vmatprep.mubr.bf16.mxu0 0
      %308 = vmatmul.mubr.bf16.gmra.mxu0 %v264
      %v309 = vpop.f32.mrf.mxu0
      %v310 = vadd.f32 0.0, %v309
      %v311 = vpop.f32.mrf.mxu0
      %v312 = vpop.f32.mrf.mxu0
      %v313 = vadd.f32 0.0, %v312
      %v314 = vpop.f32.mrf.mxu0
      %315 = vmatprep.mubr.bf16.mxu0 0
      %316 = vmatmul.mubr.bf16.gmra.mxu0 %v267
      %v317 = vpop.f32.mrf.mxu0
      %v318 = vadd.f32 0.0, %v317
      %v319 = vpop.f32.mrf.mxu0
      %v320 = vpop.f32.mrf.mxu0
      %v321 = vadd.f32 0.0, %v320
      %v322 = vpop.f32.mrf.mxu0
      %323 = vmatprep.mubr.bf16.mxu0 0
      %324 = vmatmul.mubr.bf16.gmra.mxu0 %v270
      %v325 = vpop.f32.mrf.mxu0
      %v326 = vadd.f32 0.0, %v325
      %v327 = vpop.f32.mrf.mxu0
      %v328 = vpop.f32.mrf.mxu0
      %v329 = vadd.f32 0.0, %v328
      %v330 = vpop.f32.mrf.mxu0
      %331 = vmatprep.mubr.bf16.mxu0 0
      %332 = vmatmul.mubr.bf16.gmra.mxu0 %v273
      %v333 = vpop.f32.mrf.mxu0
      %v334 = vadd.f32 0.0, %v333
      %v335 = vpop.f32.mrf.mxu0
      %v336 = vpop.f32.mrf.mxu0
      %v337 = vadd.f32 0.0, %v336
      %v338 = vpop.f32.mrf.mxu0
      %339 = vdwg.mxu0
      %v340 = vld [vmem:[%s2] sm:$0x1]
      %v342 = vlaneseq
      %v343 = vshrl.u32 %v342, 7
      %v344 = vsub.s32 0, %v343
      %v345 = vrot.slane %v340, %v344
      %v347 = vmul.f32 %v310, %v345
      %v348 = vmul.f32 %v313, %v345
      %v349 = vmul.f32 %v318, %v345
      %v350 = vmul.f32 %v321, %v345
      %v351 = vmul.f32 %v326, %v345
      %v352 = vmul.f32 %v329, %v345
      %v353 = vmul.f32 %v334, %v345
      %v354 = vmul.f32 %v337, %v345
      %v355 = vld [vmem:[%s3] sm:$0x1]
      %v357 = vlaneseq
      %v358 = vshrl.u32 %v357, 7
      %v359 = vsub.s32 0, %v358
      %v360 = vrot.slane %v355, %v359
      %v362 = vadd.f32 %v347, %v360
      %v363 = vadd.f32 %v348, %v360
      %v364 = vadd.f32 %v349, %v360
      %v365 = vadd.f32 %v350, %v360
      %v366 = vadd.f32 %v351, %v360
      %v367 = vadd.f32 %v352, %v360
      %v368 = vadd.f32 %v353, %v360
      %v369 = vadd.f32 %v354, %v360
      %v370 = vtanh.pop %v362
      %v371 = vtanh.pop %v363
      %v372 = vtanh.pop %v364
      %v373 = vtanh.pop %v365
      %v374 = vtanh.pop %v366
      %v375 = vtanh.pop %v367
      %v376 = vtanh.pop %v368
      %v377 = vtanh.pop %v369
      %vm378 = vcmask 64512
      %379 = vst.msk [vmem:[%s199] sm:$0xff] %vm378, %v370
      %380 = vst.msk [vmem:[%s199 + $0x8] sm:$0xff] %vm378, %v371
      %381 = vst.msk [vmem:[%s199 + $0x10] sm:$0xff] %vm378, %v372
      %382 = vst.msk [vmem:[%s199 + $0x18] sm:$0xff] %vm378, %v373
      %383 = vst.msk [vmem:[%s199 + $0x20] sm:$0xff] %vm378, %v374
      %384 = vst.msk [vmem:[%s199 + $0x28] sm:$0xff] %vm378, %v375
      %385 = vst.msk [vmem:[%s199 + $0x30] sm:$0xff] %vm378, %v376
      %386 = vst.msk [vmem:[%s199 + $0x38] sm:$0xff] %vm378, %v377
      %s387 = smul.u32 8, %s15
      %p388 = scmp.lt.s32.totalorder %s387, 15
      %s389 = scalar_select %p388, %s387, 15
      %s390 = smul.addr %s389, 8
      %s391 = scalar_lea.vmem %s4, %s390
      // Predicated region
      $region37: #{block_forward.3} parent=35 // pred_check
        %p392 = pneg %p122
      $region38: #{block_forward.3} parent=35 // pred_check_branch
        %394 = sbr.rel (%p392) target = $region40
      $region39: #{block_forward.3} parent=35 // pred_region
        %s395 = smul.u32 8, %s15
      $region40: #{block_forward.3} parent=35 // pred_fallthru
        _
    $region36: #{block_forward.3} parent=5 // pred_fallthru
      _
    %p396 = scmp.le.s32.totalorder 2, %s10
    // Predicated region
    $region41: #{block_forward.3} parent=5 // pred_check
      %p397 = pneg %p396
    $region42: #{block_forward.3} parent=5 // pred_check_branch
      %399 = sbr.rel (%p397) target = $region44
    $region43: #{block_forward.3} parent=5 // pred_region
      %s400 = ssub.s32 %s10, 2
      // Predicated region
      $region45: #{block_forward.3} parent=43 // pred_check
        %p401 = pneg %p128
      $region46: #{block_forward.3} parent=43 // pred_check_branch
        %403 = sbr.rel (%p401) target = $region48
      $region47: #{block_forward.3} parent=43 // pred_region
        %s404 = smul.u32 8, %s16
        %p405 = scmp.lt.s32.totalorder %s404, 15
        %s406 = scalar_select %p405, %s404, 15
        %s407 = smul.addr %s406, 8
        %s408 = scalar_lea.vmem %s4, %s407
      $region48: #{block_forward.3} parent=43 // pred_fallthru
        _
    $region44: #{block_forward.3} parent=5 // pred_fallthru
      _
  $region6: #{block_forward.3} parent=0 // loop_footer
    %s14 = sadd.s32 1, %s10
  $region7: #{block_forward.3} parent=0 // loop_footer_branch
    %9 = sbr.rel target = $region3
  $region8: #{block_forward.3} parent=0 // loop_exit
    _

// kernel: block_forward.2
$region0: #{block_forward.2}
  #allocation0 [shape = 'u32[]', space=smem, size = 0x4, offset = 0x4, fixed_abs, tag = 'smem constant byte address 0x4 - core index']
  #allocation1 [shape = 'u32[144,128]{1,0:T(1,128)}', space=vmem, size = 0x12000, scoped, tag = 'internal scratch']
  %s0 = inlined_call_operand.vmem [shape: bf16[128,64], index: 0, kind: input, shape index: {}]
  %s1 = inlined_call_operand.vmem [shape: bf16[64,128], index: 1, kind: input, shape index: {}]
  %s2 = inlined_call_operand.vmem [shape: f32[16,128], index: 2, kind: output, shape index: {0}]
  %s3 = inlined_call_operand.vmem [shape: f32[16,128], index: 3, kind: output, shape index: {1}]
  %4 = xla_tuple %s2, %s3
  %s5 = sld [smem:[#allocation0]]
  $region53: #{block_forward.2} parent=0
    _
  %s7 = ssub.s32 1, %s5
  %s8 = scalar_select 0, %s7, %s5
  loop: start=0, step=1, limit=4
  $region2: #{block_forward.2} parent=0 // loop_pre_header
    _
  $region3: #{block_forward.2} parent=0 // loop_header
    %s10 = sphi 0, %s14
    %p11 = scmp.ge.s32.totalorder %s10, 4
    %s17 = sphi 0, %s29
    %s18 = sphi 0, %s25
    %s19 = sphi 0, %s17
    %s20 = sphi 0, %s18
    %s21 = sphi 0, %s19
    %s22 = sphi 0, %s20
    %s34 = sphi 0, %s36
    %s37 = sphi 0, %s34
    %s38 = sphi 0, %s37
    %s54 = sphi 0, %s38
    %s58 = sphi 0, %s58
    %s60 = sphi 0, %s58
    %s61 = sphi 0, %s60
    %s75 = sphi 0, %s61
    %s81 = sphi 0, %s83
    %s84 = sphi 0, %s81
    %s85 = sphi 0, %s84
    %s101 = sphi 0, %s85
    %s107 = sphi 0, %s109
    %s110 = sphi 0, %s107
    %s111 = sphi 0, %s110
    %s127 = sphi 0, %s111
  $region4: #{block_forward.2} parent=0 // loop_header_branch
    %13 = sbr.rel (%p11) target = $region8
  $region5: #{block_forward.2} parent=0 // loop_body
    %s15 = ssub.s32 %s10, 1
    %s16 = ssub.s32 %s10, 2
    %s23 = sadd.s32 1, %s18
    %p24 = scmp.ge.s32.totalorder %s23, 1
    %s25 = scalar_select %p24, 0, %s23
    %s26 = sadd.s32 1, %s17
    %s27 = scalar_select %p24, %s26, %s17
    %p28 = scmp.ge.s32.totalorder %s27, 2
    %s29 = scalar_select %p28, 0, %s27
    %s30 = sadd.s32 %s17, %s18
    %s31 = sadd.s32 %s29, %s25
    %s32 = ssub.s32 %s30, %s31
    %p33 = scmp.eq.s32.totalorder %s32, 0
    %s35 = sadd.s32 %s34, 1
    %s36 = scalar_select %p33, %s34, %s35
    %p39 = pneg %p33
    %p40 = scmp.eq.s32.totalorder %s10, 1
    %p41 = por %p39, %p40
    %p42 = scmp.ne.s32.totalorder %s34, %s37
    %p43 = scmp.eq.s32.totalorder %s10, 0
    %p44 = por %p42, %p43
    %p45 = scmp.ne.s32.totalorder %s34, %s37
    %p46 = scmp.eq.s32.totalorder %s15, 1
    %p47 = por %p45, %p46
    %p48 = scmp.ne.s32.totalorder %s37, %s38
    %p49 = scmp.eq.s32.totalorder %s15, 0
    %p50 = por %p48, %p49
    %p51 = scmp.ne.s32.totalorder %s37, %s38
    %p52 = scmp.eq.s32.totalorder %s16, 1
    %p53 = por %p51, %p52
    %p55 = scmp.ne.s32.totalorder %s38, %s54
    %p56 = scmp.eq.s32.totalorder %s16, 0
    %p57 = por %p55, %p56
    %s59 = sadd.s32 %s58, 1
    %p62 = scmp.eq.s32.totalorder %s10, 1
    %p63 = scmp.ne.s32.totalorder %s58, %s60
    %p64 = scmp.eq.s32.totalorder %s10, 0
    %p65 = por %p63, %p64
    %p66 = scmp.ne.s32.totalorder %s58, %s60
    %p67 = scmp.eq.s32.totalorder %s15, 1
    %p68 = por %p66, %p67
    %p69 = scmp.ne.s32.totalorder %s60, %s61
    %p70 = scmp.eq.s32.totalorder %s15, 0
    %p71 = por %p69, %p70
    %p72 = scmp.ne.s32.totalorder %s60, %s61
    %p73 = scmp.eq.s32.totalorder %s16, 1
    %p74 = por %p72, %p73
    %p76 = scmp.ne.s32.totalorder %s61, %s75
    %p77 = scmp.eq.s32.totalorder %s16, 0
    %p78 = por %p76, %p77
    %s79 = ssub.s32 %s17, %s29
    %p80 = scmp.eq.s32.totalorder %s79, 0
    %s82 = sadd.s32 %s81, 1
    %s83 = scalar_select %p80, %s81, %s82
    %p86 = pneg %p80
    %p87 = scmp.eq.s32.totalorder %s10, 1
    %p88 = por %p86, %p87
    %p89 = scmp.ne.s32.totalorder %s81, %s84
    %p90 = scmp.eq.s32.totalorder %s10, 0
    %p91 = por %p89, %p90
    %p92 = scmp.ne.s32.totalorder %s81, %s84
    %p93 = scmp.eq.s32.totalorder %s15, 1
    %p94 = por %p92, %p93
    %p95 = scmp.ne.s32.totalorder %s84, %s85
    %p96 = scmp.eq.s32.totalorder %s15, 0
    %p97 = por %p95, %p96
    %p98 = scmp.ne.s32.totalorder %s84, %s85
    %p99 = scmp.eq.s32.totalorder %s16, 1
    %p100 = por %p98, %p99
    %p102 = scmp.ne.s32.totalorder %s85, %s101
    %p103 = scmp.eq.s32.totalorder %s16, 0
    %p104 = por %p102, %p103
    %s105 = ssub.s32 %s17, %s29
    %p106 = scmp.eq.s32.totalorder %s105, 0
    %s108 = sadd.s32 %s107, 1
    %s109 = scalar_select %p106, %s107, %s108
    %p112 = pneg %p106
    %p113 = scmp.eq.s32.totalorder %s10, 1
    %p114 = por %p112, %p113
    %p115 = scmp.ne.s32.totalorder %s107, %s110
    %p116 = scmp.eq.s32.totalorder %s10, 0
    %p117 = por %p115, %p116
    %p118 = scmp.ne.s32.totalorder %s107, %s110
    %p119 = scmp.eq.s32.totalorder %s15, 1
    %p120 = por %p118, %p119
    %p121 = scmp.ne.s32.totalorder %s110, %s111
    %p122 = scmp.eq.s32.totalorder %s15, 0
    %p123 = por %p121, %p122
    %p124 = scmp.ne.s32.totalorder %s110, %s111
    %p125 = scmp.eq.s32.totalorder %s16, 1
    %p126 = por %p124, %p125
    %p128 = scmp.ne.s32.totalorder %s111, %s127
    %p129 = scmp.eq.s32.totalorder %s16, 0
    %p130 = por %p128, %p129
    %p131 = scmp.le.s32.totalorder 1, %s10
    %p132 = scmp.lt.s32.totalorder %s10, 3
    %p133 = pnand %p131, %p132
    %p134 = pneg %p133
    // Predicated region
    $region9: #{block_forward.2} parent=5 // pred_check
      _
    $region10: #{block_forward.2} parent=5 // pred_check_branch
      %136 = sbr.rel (%p133) target = $region12
    $region11: #{block_forward.2} parent=5 // pred_region
      %s137 = ssub.s32 %s10, 1
      // Predicated region
      $region13: #{block_forward.2} parent=11 // pred_check
        %p138 = pneg %p71
      $region14: #{block_forward.2} parent=11 // pred_check_branch
        %140 = sbr.rel (%p138) target = $region16
      $region15: #{block_forward.2} parent=11 // pred_region
        _
      $region16: #{block_forward.2} parent=11 // pred_fallthru
        _
    $region12: #{block_forward.2} parent=5 // pred_fallthru
      _
    %p141 = scmp.lt.s32.totalorder %s10, 2
    // Predicated region
    $region17: #{block_forward.2} parent=5 // pred_check
      %p142 = pneg %p141
    $region18: #{block_forward.2} parent=5 // pred_check_branch
      %144 = sbr.rel (%p142) target = $region20
    $region19: #{block_forward.2} parent=5 // pred_region
      // Predicated region
      $region21: #{block_forward.2} parent=19 // pred_check
        %p145 = pneg %p44
      $region22: #{block_forward.2} parent=19 // pred_check_branch
        %147 = sbr.rel (%p145) target = $region24
      $region23: #{block_forward.2} parent=19 // pred_region
        %s148 = sadd.s32 %s17, %s18
        %s149 = smul.u32 8, %s148
        %p150 = scmp.lt.s32.totalorder %s149, 15
        %s151 = scalar_select %p150, %s149, 15
        %s152 = smul.addr %s151, 4
        %s153 = scalar_lea.vmem %s0, %s152
        %s154 = sadd.s32 %s17, %s18
        %s155 = smul.u32 8, %s154
      $region24: #{block_forward.2} parent=19 // pred_fallthru
        _
    $region20: #{block_forward.2} parent=5 // pred_fallthru
      _
    %p156 = scmp.le.s32.totalorder 1, %s10
    %p157 = scmp.lt.s32.totalorder %s10, 3
    %p158 = pnand %p156, %p157
    %p159 = pneg %p158
    // Predicated region
    $region25: #{block_forward.2} parent=5 // pred_check
      _
    $region26: #{block_forward.2} parent=5 // pred_check_branch
      %161 = sbr.rel (%p158) target = $region28
    $region27: #{block_forward.2} parent=5 // pred_region
      %s162 = ssub.s32 %s10, 1
      %s163 = sadd.s32 %s19, %s20
      %s164 = smul.u32 8, %s163
      %p165 = scmp.lt.s32.totalorder %s164, 15
      %s166 = scalar_select %p165, %s164, 15
      %s167 = smul.addr %s166, 4
      %s168 = scalar_lea.vmem %s0, %s167
      %p169 = pneg %p50
      %p170 = pneg %p47
      %p171 = pneg %p71
      %p172 = pneg %p68
      %p173 = pneg %p97
      %p174 = pneg %p94
      %p175 = scmp.lt.s32.totalorder %s19, 1
      %s176 = scalar_select %p175, %s19, 1
      %s177 = smul.addr %s176, 8
      %s178 = scalar_lea.vmem %s2, %s177
      %p179 = pneg %p123
      %p180 = pneg %p120
      %p181 = scmp.lt.s32.totalorder %s19, 1
      %s182 = scalar_select %p181, %s19, 1
      %s183 = smul.addr %s182, 8
      %s184 = scalar_lea.vmem %s3, %s183
      %s185 = sadd.s32 %s19, %s20
      %s186 = smul.u32 8, %s185
      %p187 = scmp.lt.s32.totalorder %s186, 15
      %s188 = scalar_select %p187, %s186, 15
      %s189 = smul.addr %s188, 4
      %s190 = scalar_lea.vmem %s0, %s189
      %s191 = sadd.s32 %s19, %s20
      %s192 = smul.u32 8, %s191
      %p193 = scmp.lt.s32.totalorder %s19, 1
      %s194 = scalar_select %p193, %s19, 1
      %s195 = smul.addr %s194, 8
      %s196 = scalar_lea.vmem %s2, %s195
      %p197 = scmp.lt.s32.totalorder %s19, 1
      %s198 = scalar_select %p197, %s19, 1
      %s199 = smul.addr %s198, 8
      %s200 = scalar_lea.vmem %s3, %s199
      %p202 = scmp.eq.s32.totalorder %s20, 0
      // Predicated region
      $region29: #{block_forward.2} parent=27 // pred_check
        %p203 = pneg %p202
      $region30: #{block_forward.2} parent=27 // pred_check_branch
        %205 = sbr.rel (%p203) target = $region32
      $region31: #{block_forward.2} parent=27 // pred_region
        %206 = vst [vmem:[%s196] sm:$0xff] 0.0
        %207 = vst [vmem:[%s200] sm:$0xff] 0.0
      $region32: #{block_forward.2} parent=27 // pred_fallthru
        _
      %v208 = vld [vmem:[%s190] sm:$0xf]
      %v209 = vld [vmem:[%s190 + $0x4] sm:$0xf]
      %v210 = vld [vmem:[%s190 + $0x8] sm:$0xf]
      %v211 = vld [vmem:[%s190 + $0xc] sm:$0xf]
      %v212 = vld [vmem:[%s190 + $0x10] sm:$0xf]
      %v213 = vld [vmem:[%s190 + $0x14] sm:$0xf]
      %v214 = vld [vmem:[%s190 + $0x18] sm:$0xf]
      %v215 = vld [vmem:[%s190 + $0x1c] sm:$0xf]
      %v216 = vld [vmem:[%s1] sm:$0xf]
      %v217 = vld [vmem:[%s1 + $0x4] sm:$0xf]
      %v218 = vld [vmem:[%s1 + $0x8] sm:$0xf]
      %v219 = vld [vmem:[%s1 + $0xc] sm:$0xf]
      %v220 = vld [vmem:[%s1 + $0x10] sm:$0xf]
      %v221 = vld [vmem:[%s1 + $0x14] sm:$0xf]
      %v222 = vld [vmem:[%s1 + $0x18] sm:$0xf]
      %v223 = vld [vmem:[%s1 + $0x1c] sm:$0xf]
      %v232 = vunpack.c.l.b16 %v208
      %v233 = vunpack.c.l.b16 %v209
      %v234 = vunpack.c.l.b16 %v210
      %v235 = vunpack.c.l.b16 %v211
      %v236 = vunpack.c.l.b16 %v212
      %v237 = vunpack.c.l.b16 %v213
      %v238 = vunpack.c.l.b16 %v214
      %v239 = vunpack.c.l.b16 %v215
      %v240 = vpack.c.b16 %v233, %v232
      %v241 = vpack.c.b16 %v235, %v234
      %v242 = vpack.c.b16 %v237, %v236
      %v243 = vpack.c.b16 %v239, %v238
      %v252 = vunpack.c.l.b16 %v216
      %v253 = vunpack.c.l.b16 %v217
      %v254 = vunpack.c.l.b16 %v218
      %v255 = vunpack.c.l.b16 %v219
      %v256 = vunpack.c.l.b16 %v220
      %v257 = vunpack.c.l.b16 %v221
      %v258 = vunpack.c.l.b16 %v222
      %v259 = vunpack.c.l.b16 %v223
      %v260 = vpack.c.b16 %v253, %v252
      %v261 = vpack.c.b16 %v255, %v254
      %v262 = vpack.c.b16 %v257, %v256
      %v263 = vpack.c.b16 %v259, %v258
      %vm268 = vcmask 523264
      %v270 = vsel %vm268, %v240, 0
      %v273 = vsel %vm268, %v241, 0
      %v276 = vsel %vm268, %v242, 0
      %v279 = vsel %vm268, %v243, 0
      %281 = vmatprep.subr.bf16.mxu0 0
      %282 = vmatpush1.bf16.msra.mxu0 0
      %283 = vmatprep.subr.bf16.mxu0 0
      %284 = vmatpush1.bf16.msra.mxu0 0
      %285 = vmatprep.subr.bf16.mxu0 0
      %286 = vmatpush1.bf16.msra.mxu0 0
      %287 = vmatprep.subr.bf16.mxu0 0
      %288 = vmatpush1.bf16.msra.mxu0 0
      %289 = vmatprep.subr.bf16.mxu0 0
      %290 = vmatpush1.bf16.msra.mxu0 %v263
      %291 = vmatprep.subr.bf16.mxu0 0
      %292 = vmatpush1.bf16.msra.mxu0 %v262
      %293 = vmatprep.subr.bf16.mxu0 0
      %294 = vmatpush1.bf16.msra.mxu0 %v261
      %295 = vmatprep.subr.bf16.mxu0 0
      %296 = vmatpush1.bf16.msra.mxu0 %v260
      %297 = vmatprep.subr.bf16.mxu0 0
      %298 = vmatpush2.bf16.msra.mxu0 0
      %299 = vmatprep.subr.bf16.mxu0 0
      %300 = vmatpush2.bf16.msra.mxu0 0
      %301 = vmatprep.subr.bf16.mxu0 0
      %302 = vmatpush2.bf16.msra.mxu0 0
      %303 = vmatprep.subr.bf16.mxu0 0
      %304 = vmatpush2.bf16.msra.mxu0 0
      %305 = vmatprep.subr.bf16.mxu0 0
      %306 = vmatpush2.bf16.msra.mxu0 0
      %307 = vmatprep.subr.bf16.mxu0 0
      %308 = vmatpush2.bf16.msra.mxu0 0
      %309 = vmatprep.subr.bf16.mxu0 0
      %310 = vmatpush2.bf16.msra.mxu0 0
      %311 = vmatprep.subr.bf16.mxu0 0
      %312 = vmatpush2.bf16.msra.mxu0 0
      %313 = vmatprep.mubr.bf16.mxu0 0
      %314 = vmatmul.mubr.bf16.gmra.mxu0 %v270
      %v315 = vpop.f32.mrf.mxu0
      %v316 = vadd.f32 0.0, %v315
      %v317 = vpop.f32.mrf.mxu0
      %v318 = vpop.f32.mrf.mxu0
      %v319 = vadd.f32 0.0, %v318
      %v320 = vpop.f32.mrf.mxu0
      %321 = vmatprep.mubr.bf16.mxu0 0
      %322 = vmatmul.mubr.bf16.gmra.mxu0 %v273
      %v323 = vpop.f32.mrf.mxu0
      %v324 = vadd.f32 0.0, %v323
      %v325 = vpop.f32.mrf.mxu0
      %v326 = vpop.f32.mrf.mxu0
      %v327 = vadd.f32 0.0, %v326
      %v328 = vpop.f32.mrf.mxu0
      %329 = vmatprep.mubr.bf16.mxu0 0
      %330 = vmatmul.mubr.bf16.gmra.mxu0 %v276
      %v331 = vpop.f32.mrf.mxu0
      %v332 = vadd.f32 0.0, %v331
      %v333 = vpop.f32.mrf.mxu0
      %v334 = vpop.f32.mrf.mxu0
      %v335 = vadd.f32 0.0, %v334
      %v336 = vpop.f32.mrf.mxu0
      %337 = vmatprep.mubr.bf16.mxu0 0
      %338 = vmatmul.mubr.bf16.gmra.mxu0 %v279
      %v339 = vpop.f32.mrf.mxu0
      %v340 = vadd.f32 0.0, %v339
      %v341 = vpop.f32.mrf.mxu0
      %v342 = vpop.f32.mrf.mxu0
      %v343 = vadd.f32 0.0, %v342
      %v344 = vpop.f32.mrf.mxu0
      %345 = vdwg.mxu0
      %v346 = vld [vmem:[%s196] sm:$0x1]
      %v347 = vadd.f32 %v316, %v319
      %v348 = vadd.f32 %v347, %v324
      %v349 = vadd.f32 %v348, %v327
      %v350 = vadd.f32 %v349, %v332
      %v351 = vadd.f32 %v350, %v335
      %v352 = vadd.f32 %v351, %v340
      %v353 = vadd.f32 %v352, %v343
      %v354 = vrot.slane %v353, 4
      %v355 = vadd.f32 %v353, %v354
      %v356 = vrot.slane %v355, 2
      %v357 = vadd.f32 %v355, %v356
      %v358 = vrot.slane %v357, 1
      %v359 = vadd.f32 %v357, %v358
      %v360 = vadd.f32 %v346, %v359
      %361 = vst [vmem:[%s196] sm:$0x1] %v360
      %v362 = vld [vmem:[%s200] sm:$0x1]
      %v363 = vmul.f32 %v316, %v316
      %v364 = vmul.f32 %v319, %v319
      %v365 = vmul.f32 %v324, %v324
      %v366 = vmul.f32 %v327, %v327
      %v367 = vmul.f32 %v332, %v332
      %v368 = vmul.f32 %v335, %v335
      %v369 = vmul.f32 %v340, %v340
      %v370 = vmul.f32 %v343, %v343
      %v371 = vadd.f32 %v363, %v364
      %v372 = vadd.f32 %v371, %v365
      %v373 = vadd.f32 %v372, %v366
      %v374 = vadd.f32 %v373, %v367
      %v375 = vadd.f32 %v374, %v368
      %v376 = vadd.f32 %v375, %v369
      %v377 = vadd.f32 %v376, %v370
      %v378 = vrot.slane %v377, 4
      %v379 = vadd.f32 %v377, %v378
      %v380 = vrot.slane %v379, 2
      %v381 = vadd.f32 %v379, %v380
      %v382 = vrot.slane %v381, 1
      %v383 = vadd.f32 %v381, %v382
      %v384 = vadd.f32 %v362, %v383
      %385 = vst [vmem:[%s200] sm:$0x1] %v384
      %p386 = scmp.lt.s32.totalorder %s19, 1
      %s387 = scalar_select %p386, %s19, 1
      %s388 = smul.addr %s387, 8
      %s389 = scalar_lea.vmem %s2, %s388
      %p390 = scmp.lt.s32.totalorder %s19, 1
      %s391 = scalar_select %p390, %s19, 1
      %s392 = smul.addr %s391, 8
      %s393 = scalar_lea.vmem %s3, %s392
      // Predicated region
      $region33: #{block_forward.2} parent=27 // pred_check
        %p394 = pneg %p94
      $region34: #{block_forward.2} parent=27 // pred_check_branch
        %396 = sbr.rel (%p394) target = $region36
      $region35: #{block_forward.2} parent=27 // pred_region
        _
      $region36: #{block_forward.2} parent=27 // pred_fallthru
        _
      // Predicated region
      $region37: #{block_forward.2} parent=27 // pred_check
        %p397 = pneg %p120
      $region38: #{block_forward.2} parent=27 // pred_check_branch
        %399 = sbr.rel (%p397) target = $region40
      $region39: #{block_forward.2} parent=27 // pred_region
        _
      $region40: #{block_forward.2} parent=27 // pred_fallthru
        _
    $region28: #{block_forward.2} parent=5 // pred_fallthru
      _
    %p400 = scmp.le.s32.totalorder 2, %s10
    // Predicated region
    $region41: #{block_forward.2} parent=5 // pred_check
      %p401 = pneg %p400
    $region42: #{block_forward.2} parent=5 // pred_check_branch
      %403 = sbr.rel (%p401) target = $region44
    $region43: #{block_forward.2} parent=5 // pred_region
      %s404 = ssub.s32 %s10, 2
      // Predicated region
      $region45: #{block_forward.2} parent=43 // pred_check
        %p405 = pneg %p100
      $region46: #{block_forward.2} parent=43 // pred_check_branch
        %407 = sbr.rel (%p405) target = $region48
      $region47: #{block_forward.2} parent=43 // pred_region
        %p408 = scmp.lt.s32.totalorder %s21, 1
        %s409 = scalar_select %p408, %s21, 1
        %s410 = smul.addr %s409, 8
        %s411 = scalar_lea.vmem %s2, %s410
      $region48: #{block_forward.2} parent=43 // pred_fallthru
        _
      // Predicated region
      $region49: #{block_forward.2} parent=43 // pred_check
        %p412 = pneg %p126
      $region50: #{block_forward.2} parent=43 // pred_check_branch
        %414 = sbr.rel (%p412) target = $region52
      $region51: #{block_forward.2} parent=43 // pred_region
        %p415 = scmp.lt.s32.totalorder %s21, 1
        %s416 = scalar_select %p415, %s21, 1
        %s417 = smul.addr %s416, 8
        %s418 = scalar_lea.vmem %s3, %s417
      $region52: #{block_forward.2} parent=43 // pred_fallthru
        _
    $region44: #{block_forward.2} parent=5 // pred_fallthru
      _
  $region6: #{block_forward.2} parent=0 // loop_footer
    %s14 = sadd.s32 1, %s10
  $region7: #{block_forward.2} parent=0 // loop_footer_branch
    %9 = sbr.rel target = $region3
  $region8: #{block_forward.2} parent=0 // loop_exit
    _

</llo_original>
